<compile_context>
chip_gen: v6e
topology: v6e:2x2x1
jax: 0.10.0
libtpu: 0.0.40
codegen_flags: <defaults>
</compile_context>

<pallas_src>
import math

import jax
import jax.numpy as jnp
from jax.experimental import pallas as pl
from jax.experimental.pallas import tpu as pltpu


def _sens_margin_ranking_kernel(margin_ref, x1_ref, x2_ref, y_ref, o_ref):
    # margin lives in SMEM as a (1, 1) scalar.
    m = margin_ref[0, 0]
    x1 = x1_ref[...].astype(jnp.float32)
    x2 = x2_ref[...].astype(jnp.float32)
    yv = y_ref[...].astype(jnp.float32)
    val = (x2 - x1) * yv + m                                   # margin - y*(x1 - x2)
    o_ref[...] = jnp.maximum(val, 0.0).astype(o_ref.dtype)     # clamp(min=0)


def sens_margin_ranking_loss(input1, input2, y, margin,
                             sensweight=None, size_average=True):
    """Elementwise margin ranking loss (no reduction), Pallas TPU kernel.

    input1, input2, y: arrays of identical shape (any rank / float dtype).
    margin: python float or 0-d array.
    sensweight / size_average: accepted for API parity; the reference forward
    never applies them before returning, so they are intentionally unused.
    """
    # TODO(synk): `sensweight` / `size_average` are unused in the reference
    # forward pass, so they are not applied here either.
    assert input1.shape == input2.shape == y.shape
    orig_shape = input1.shape
    out_dtype = input1.dtype
    N = math.prod(orig_shape) if orig_shape else 1

    # Lane-dense layout: flatten to (rows, LANE) with LANE a large multiple of
    # 128 so the output store lowers to unmasked vst; tile rows so Pallas
    # double-buffers the HBM<->VMEM DMA (real pipelining, not one big block).
    LANE = 1024 if N >= 1024 else 128
    R = -(-N // LANE)                       # ceil(N / LANE)
    TB = min(512, -(-R // 8) * 8)           # rows/tile: multiple of 8, <= 2 MiB f32
    num_tiles = -(-R // TB)
    R_pad = num_tiles * TB
    N_pad = R_pad * LANE

    def _prep(x):
        flat = x.reshape(-1)
        if N_pad != N:
            flat = jnp.pad(flat, (0, N_pad - N))
        return flat.reshape(R_pad, LANE)    # keep native dtype; upcast in-kernel

    margin_arr = jnp.asarray(margin, dtype=jnp.float32).reshape(1, 1)
    x1p, x2p, yp = _prep(input1), _prep(input2), _prep(y)

    def _blk():
        return pl.BlockSpec((TB, LANE), lambda i: (i, 0))

    out = pl.pallas_call(
        _sens_margin_ranking_kernel,
        out_shape=jax.ShapeDtypeStruct((R_pad, LANE), out_dtype),
        grid=(num_tiles,),
        in_specs=[
            pl.BlockSpec(memory_space=pltpu.SMEM),   # margin scalar
            _blk(),                                  # input1
            _blk(),                                  # input2
            _blk(),                                  # y
        ],
        out_specs=_blk(),
        compiler_params=pltpu.CompilerParams(
            dimension_semantics=("parallel",),       # shards across v7x's 2 TCs
            vmem_limit_bytes=32 << 20),              # headroom for 2 MiB tiles x 4 arrays x 2 bufs
    )(margin_arr, x1p, x2p, yp)

    out_flat = out.reshape(-1)
    if N_pad != N:
        out_flat = out_flat[:N]
    return out_flat.reshape(orig_shape)


if __name__ == "__main__":
    key = jax.random.PRNGKey(0)
    k1, k2, k3 = jax.random.split(key, 3)

    B, D = 8, 256  # small; exercises flatten/pad path (N=2048 -> (8, 1024) slab)
    input1 = jax.random.normal(k1, (B, D), dtype=jnp.float32)
    input2 = jax.random.normal(k2, (B, D), dtype=jnp.float32)
    # y in {-1, +1} as in a ranking loss
    y = jnp.where(jax.random.bernoulli(k3, 0.5, (B, D)), 1.0, -1.0).astype(jnp.float32)
    margin = 0.5
    sensweight = jnp.ones((B, D), dtype=jnp.float32)  # unused by forward

    out = sens_margin_ranking_loss(input1, input2, y, margin,
                                   sensweight=sensweight, size_average=True)
    out = jax.block_until_ready(out)

    # correctness check against pure-JAX reference
    ref = jnp.maximum(margin - y * (input1 - input2), 0.0)
    assert out.shape == (B, D)
    assert jnp.allclose(out, ref, atol=1e-6), "mismatch vs reference"

    print("KERNEL_OK")
</pallas_src>

<mosaic_0001>
module attributes {stable_mosaic.version = 11 : i64} {
  func.func @_sens_margin_ranking_kernel(%arg0: i32, %arg1: memref<1x1xf32, #tpu.memory_space<smem>>, %arg2: memref<8x1024xf32, #tpu.memory_space<vmem>>, %arg3: memref<8x1024xf32, #tpu.memory_space<vmem>>, %arg4: memref<8x1024xf32, #tpu.memory_space<vmem>>, %arg5: memref<8x1024xf32, #tpu.memory_space<vmem>>) attributes {dimension_semantics = [#tpu.dimension_semantics<parallel>], iteration_bounds = array<i64: 1>, scalar_prefetch = 0 : i64, scratch_operands = 0 : i64, tpu.core_type = #tpu.core_type<tc>, window_params = [{transform_indices = @transform_0, window_bounds = array<i64: 1, 1>}, {transform_indices = @transform_1, window_bounds = array<i64: 8, 1024>}, {transform_indices = @transform_2, window_bounds = array<i64: 8, 1024>}, {transform_indices = @transform_3, window_bounds = array<i64: 8, 1024>}, {transform_indices = @transform_4, window_bounds = array<i64: 8, 1024>}]} {
    %c0 = arith.constant 0 : index
    %c0_0 = arith.constant 0 : index
    %0 = memref.load %arg1[%c0, %c0_0] : memref<1x1xf32, #tpu.memory_space<smem>>
    %c0_1 = arith.constant 0 : index
    %c0_2 = arith.constant 0 : index
    %1 = vector.load %arg2[%c0_1, %c0_2] : memref<8x1024xf32, #tpu.memory_space<vmem>>, vector<8x1024xf32>
    %c0_3 = arith.constant 0 : index
    %c0_4 = arith.constant 0 : index
    %2 = vector.load %arg3[%c0_3, %c0_4] : memref<8x1024xf32, #tpu.memory_space<vmem>>, vector<8x1024xf32>
    %c0_5 = arith.constant 0 : index
    %c0_6 = arith.constant 0 : index
    %3 = vector.load %arg4[%c0_5, %c0_6] : memref<8x1024xf32, #tpu.memory_space<vmem>>, vector<8x1024xf32>
    %4 = arith.subf %2, %1 : vector<8x1024xf32>
    %5 = arith.mulf %4, %3 : vector<8x1024xf32>
    %6 = vector.broadcast %0 : f32 to vector<8x1024xf32>
    %7 = arith.addf %5, %6 : vector<8x1024xf32>
    %cst = arith.constant 0.000000e+00 : f32
    %8 = vector.broadcast %cst : f32 to vector<8x1024xf32>
    %9 = arith.maximumf %7, %8 : vector<8x1024xf32>
    %c0_7 = arith.constant 0 : index
    %c0_8 = arith.constant 0 : index
    %10 = vector.load %arg5[%c0_7, %c0_8] : memref<8x1024xf32, #tpu.memory_space<vmem>>, vector<8x1024xf32>
    tpu.vector_store %arg5[%c0_7, %c0_8], %9 {strides = array<i32>} : memref<8x1024xf32, #tpu.memory_space<vmem>>, vector<8x1024xf32>,
    return
  }
  func.func @transform_0(%arg0: i32) -> (i32, i32) {
    %c0_i32 = arith.constant 0 : i32
    %c0_i32_0 = arith.constant 0 : i32
    %c0_i32_1 = arith.constant 0 : i32
    return %c0_i32, %c0_i32_0 : i32, i32
  }
  func.func @transform_1(%arg0: i32) -> (i32, i32) {
    %c0_i32 = arith.constant 0 : i32
    %c0_i32_0 = arith.constant 0 : i32
    return %arg0, %c0_i32 : i32, i32
  }
  func.func @transform_2(%arg0: i32) -> (i32, i32) {
    %c0_i32 = arith.constant 0 : i32
    %c0_i32_0 = arith.constant 0 : i32
    return %arg0, %c0_i32 : i32, i32
  }
  func.func @transform_3(%arg0: i32) -> (i32, i32) {
    %c0_i32 = arith.constant 0 : i32
    %c0_i32_0 = arith.constant 0 : i32
    return %arg0, %c0_i32 : i32, i32
  }
  func.func @transform_4(%arg0: i32) -> (i32, i32) {
    %c0_i32 = arith.constant 0 : i32
    %c0_i32_0 = arith.constant 0 : i32
    return %arg0, %c0_i32 : i32, i32
  }
}

</mosaic_0001>

<llo_original>
// kernel: tpu_custom_call.1
$region0: #{tpu_custom_call.1}
  #allocation0 [shape = 'u32[]', space=smem, size = 0x4, offset = 0x4, fixed_abs, tag = 'smem constant byte address 0x4 - core index']
  #allocation1 [shape = 'u32[144,128]{1,0:T(1,128)}', space=vmem, size = 0x12000, scoped, tag = 'internal scratch']
  #allocation2 [shape = 'f32[1,1]{1,0:T(1,128)S(6)}', space=smem, size = 0x200, scoped, tag = 'scoped memory for tpu_custom_call.1']
  %s0 = inlined_call_operand.<no memory space> [shape: f32[1,1], index: 0, kind: input, shape index: {}]
  %s1 = inlined_call_operand.hbm [shape: f32[8,1024], index: 1, kind: input, shape index: {}]
  %s2 = inlined_call_operand.hbm [shape: f32[8,1024], index: 2, kind: input, shape index: {}]
  %s3 = inlined_call_operand.hbm [shape: f32[8,1024], index: 3, kind: input, shape index: {}]
  %s4 = inlined_call_operand.hbm [shape: f32[8,1024], index: 4, kind: output, shape index: {}]
  %s5 = sld [smem:[#allocation0]]
  $region38: #{tpu_custom_call.1} parent=0
    _
  %s7 = ssub.s32 1, %s5
  %s8 = scalar_select 0, %s7, %s5
  %9 = sst [smem:[#allocation2]] %s0
  $region1: #{tpu_custom_call.1} parent=0
    #allocation3 [shape = 'u8[32768]{0}', space=vmem, size = 0x8000, scoped, tag = 'input window, operand 1, single buffered']
    #allocation4 [shape = 's32[1]{0}', space=sflag, size = 0x4, scoped, tag = 'scoped memory for tpu_custom_call.1']
    #allocation5 [shape = 's32[1]{0}', space=sflag, size = 0x4, scoped, tag = 'scoped memory for tpu_custom_call.1']
    #allocation6 [shape = 'u8[32768]{0}', space=vmem, size = 0x8000, scoped, tag = 'input window, operand 2, single buffered']
    #allocation7 [shape = 's32[1]{0}', space=sflag, size = 0x4, scoped, tag = 'scoped memory for tpu_custom_call.1']
    #allocation8 [shape = 'u8[32768]{0}', space=vmem, size = 0x8000, scoped, tag = 'input window, operand 3, single buffered']
    #allocation9 [shape = 'u8[32768]{0}', space=vmem, size = 0x8000, scoped, tag = 'output window, operand 0, single buffered']
    %10 = vsyncpa [#allocation4], 0
    %11 = vsyncpa [#allocation7], 0
    %12 = vsyncpa [#allocation5], 0
    // Predicated region
    $region2: #{tpu_custom_call.1} parent=1 // pred_check
      _
    $region3: #{tpu_custom_call.1} parent=1 // pred_check_branch
      %14 = sbr.rel (0) target = $region5
    $region4: #{tpu_custom_call.1} parent=1 // pred_region
      _
    $region5: #{tpu_custom_call.1} parent=1 // pred_fallthru
      _
    // Predicated region
    $region6: #{tpu_custom_call.1} parent=1 // pred_check
      _
    $region7: #{tpu_custom_call.1} parent=1 // pred_check_branch
      %16 = sbr.rel (0) target = $region9
    $region8: #{tpu_custom_call.1} parent=1 // pred_region
      %s18 = ssub.s32 1024, 1024
      %19 = vsyncadd [#allocation4], %s18
      %s21 = sshll.u32 [#allocation3], 4
      %s22 = int_to_ptr.vmem [resolvable:$true] %s21
      %24 = dma.hbm_to_vmem [thread:$0]  %s1, 1024, %s22, [#allocation4]
    $region9: #{tpu_custom_call.1} parent=1 // pred_fallthru
      _
    // Predicated region
    $region10: #{tpu_custom_call.1} parent=1 // pred_check
      _
    $region11: #{tpu_custom_call.1} parent=1 // pred_check_branch
      %26 = sbr.rel (0) target = $region13
    $region12: #{tpu_custom_call.1} parent=1 // pred_region
      %s28 = ssub.s32 1024, 1024
      %29 = vsyncadd [#allocation7], %s28
      %s31 = sshll.u32 [#allocation6], 4
      %s32 = int_to_ptr.vmem [resolvable:$true] %s31
      %34 = dma.hbm_to_vmem [thread:$0]  %s2, 1024, %s32, [#allocation7]
    $region13: #{tpu_custom_call.1} parent=1 // pred_fallthru
      _
    // Predicated region
    $region14: #{tpu_custom_call.1} parent=1 // pred_check
      _
    $region15: #{tpu_custom_call.1} parent=1 // pred_check_branch
      %36 = sbr.rel (0) target = $region17
    $region16: #{tpu_custom_call.1} parent=1 // pred_region
      %s38 = ssub.s32 1024, 1024
      %39 = vsyncadd [#allocation7], %s38
      %s41 = sshll.u32 [#allocation8], 4
      %s42 = int_to_ptr.vmem [resolvable:$true] %s41
      %44 = dma.hbm_to_vmem [thread:$0]  %s3, 1024, %s42, [#allocation7]
    $region17: #{tpu_custom_call.1} parent=1 // pred_fallthru
      _
    // Predicated region
    $region18: #{tpu_custom_call.1} parent=1 // pred_check
      _
    $region19: #{tpu_custom_call.1} parent=1 // pred_check_branch
      %46 = sbr.rel (0) target = $region21
    $region20: #{tpu_custom_call.1} parent=1 // pred_region
      %47 = dma.done [#allocation4], 1024
    $region21: #{tpu_custom_call.1} parent=1 // pred_fallthru
      _
    // Predicated region
    $region22: #{tpu_custom_call.1} parent=1 // pred_check
      _
    $region23: #{tpu_custom_call.1} parent=1 // pred_check_branch
      %49 = sbr.rel (0) target = $region25
    $region24: #{tpu_custom_call.1} parent=1 // pred_region
      %50 = dma.done [#allocation7], 1024
    $region25: #{tpu_custom_call.1} parent=1 // pred_fallthru
      _
    // Predicated region
    $region26: #{tpu_custom_call.1} parent=1 // pred_check
      _
    $region27: #{tpu_custom_call.1} parent=1 // pred_check_branch
      %52 = sbr.rel (0) target = $region29
    $region28: #{tpu_custom_call.1} parent=1 // pred_region
      %53 = dma.done [#allocation7], 1024
    $region29: #{tpu_custom_call.1} parent=1 // pred_fallthru
      _
    %s54 = sld [smem:[#allocation2]]
    %v55 = vld [vmem:[#allocation3] sm:$0xff]
    %v56 = vld [vmem:[#allocation3 + $0x8] sm:$0xff]
    %v57 = vld [vmem:[#allocation3 + $0x10] sm:$0xff]
    %v58 = vld [vmem:[#allocation3 + $0x18] sm:$0xff]
    %v59 = vld [vmem:[#allocation3 + $0x20] sm:$0xff]
    %v60 = vld [vmem:[#allocation3 + $0x28] sm:$0xff]
    %v61 = vld [vmem:[#allocation3 + $0x30] sm:$0xff]
    %v62 = vld [vmem:[#allocation3 + $0x38] sm:$0xff]
    %v63 = vld [vmem:[#allocation6] sm:$0xff]
    %v64 = vld [vmem:[#allocation6 + $0x8] sm:$0xff]
    %v65 = vld [vmem:[#allocation6 + $0x10] sm:$0xff]
    %v66 = vld [vmem:[#allocation6 + $0x18] sm:$0xff]
    %v67 = vld [vmem:[#allocation6 + $0x20] sm:$0xff]
    %v68 = vld [vmem:[#allocation6 + $0x28] sm:$0xff]
    %v69 = vld [vmem:[#allocation6 + $0x30] sm:$0xff]
    %v70 = vld [vmem:[#allocation6 + $0x38] sm:$0xff]
    %v71 = vld [vmem:[#allocation8] sm:$0xff]
    %v72 = vld [vmem:[#allocation8 + $0x8] sm:$0xff]
    %v73 = vld [vmem:[#allocation8 + $0x10] sm:$0xff]
    %v74 = vld [vmem:[#allocation8 + $0x18] sm:$0xff]
    %v75 = vld [vmem:[#allocation8 + $0x20] sm:$0xff]
    %v76 = vld [vmem:[#allocation8 + $0x28] sm:$0xff]
    %v77 = vld [vmem:[#allocation8 + $0x30] sm:$0xff]
    %v78 = vld [vmem:[#allocation8 + $0x38] sm:$0xff]
    %v79 = vsub.f32 %v63, %v55
    %v80 = vsub.f32 %v64, %v56
    %v81 = vsub.f32 %v65, %v57
    %v82 = vsub.f32 %v66, %v58
    %v83 = vsub.f32 %v67, %v59
    %v84 = vsub.f32 %v68, %v60
    %v85 = vsub.f32 %v69, %v61
    %v86 = vsub.f32 %v70, %v62
    %v87 = vmul.f32 %v79, %v71
    %v88 = vmul.f32 %v80, %v72
    %v89 = vmul.f32 %v81, %v73
    %v90 = vmul.f32 %v82, %v74
    %v91 = vmul.f32 %v83, %v75
    %v92 = vmul.f32 %v84, %v76
    %v93 = vmul.f32 %v85, %v77
    %v94 = vmul.f32 %v86, %v78
    %v95 = vstv %s54
    %v96 = vadd.f32 %v87, %v95
    %v97 = vadd.f32 %v88, %v95
    %v98 = vadd.f32 %v89, %v95
    %v99 = vadd.f32 %v90, %v95
    %v100 = vadd.f32 %v91, %v95
    %v101 = vadd.f32 %v92, %v95
    %v102 = vadd.f32 %v93, %v95
    %v103 = vadd.f32 %v94, %v95
    %v104 = vmax.f32 %v96, 0.0
    %v105 = vmax.f32 %v97, 0.0
    %v106 = vmax.f32 %v98, 0.0
    %v107 = vmax.f32 %v99, 0.0
    %v108 = vmax.f32 %v100, 0.0
    %v109 = vmax.f32 %v101, 0.0
    %v110 = vmax.f32 %v102, 0.0
    %v111 = vmax.f32 %v103, 0.0
    %112 = vst [vmem:[#allocation9] sm:$0xff] %v104
    %113 = vst [vmem:[#allocation9 + $0x8] sm:$0xff] %v105
    %114 = vst [vmem:[#allocation9 + $0x10] sm:$0xff] %v106
    %115 = vst [vmem:[#allocation9 + $0x18] sm:$0xff] %v107
    %116 = vst [vmem:[#allocation9 + $0x20] sm:$0xff] %v108
    %117 = vst [vmem:[#allocation9 + $0x28] sm:$0xff] %v109
    %118 = vst [vmem:[#allocation9 + $0x30] sm:$0xff] %v110
    %119 = vst [vmem:[#allocation9 + $0x38] sm:$0xff] %v111
    // Predicated region
    $region30: #{tpu_custom_call.1} parent=1 // pred_check
      _
    $region31: #{tpu_custom_call.1} parent=1 // pred_check_branch
      %121 = sbr.rel (0) target = $region33
    $region32: #{tpu_custom_call.1} parent=1 // pred_region
      %s123 = ssub.s32 1024, 1024
      %124 = vsyncadd [#allocation5], %s123
      %s126 = sshll.u32 [#allocation9], 4
      %s127 = int_to_ptr.vmem [resolvable:$true] %s126
      %129 = dma.vmem_to_hbm [thread:$0]  %s127, 1024, %s4, [#allocation5]
    $region33: #{tpu_custom_call.1} parent=1 // pred_fallthru
      _
    // Predicated region
    $region34: #{tpu_custom_call.1} parent=1 // pred_check
      _
    $region35: #{tpu_custom_call.1} parent=1 // pred_check_branch
      %131 = sbr.rel (0) target = $region37
    $region36: #{tpu_custom_call.1} parent=1 // pred_region
      %132 = dma.done [#allocation5], 1024
    $region37: #{tpu_custom_call.1} parent=1 // pred_fallthru
      _
    %133 = vsyncpa [#allocation4], 1
    %134 = vsyncpa [#allocation7], 1
    %135 = vsyncpa [#allocation5], 1

</llo_original>
